<compile_context>
chip_gen: v7x
topology: tpu7x:2x2x1
jax: 0.10.0
libtpu: 0.0.40
codegen_flags: <defaults>
</compile_context>

<pallas_src>
import functools

import numpy as np

import jax
import jax.numpy as jnp
from jax.experimental import pallas as pl
from jax.experimental.pallas import tpu as pltpu


def _embedding_kernel(x_ref, coef_ref, o_ref, *, in_channels):
    """One row-tile of the embedding, written in the final channel order.

    x_ref:    (TB, C)    input rows.
    coef_ref: (C+2, OC)  per-lane constants.  Rows 0..C-1: frequency selection
              rows (coef[c, t*C+c] = freq_t, 0 elsewhere; identity term has
              freq 1).  Row C: phase row (0 for sin terms, pi/2 for cos terms).
              Row C+1: identity-lane mask (1.0 on the first C lanes).
    o_ref:    (TB, OC)   output rows, OC = C*(2*N_freqs+1), PyTorch order.
    """
    C = in_channels
    x = x_ref[...].astype(jnp.float32)          # (TB, C)
    coef = coef_ref[...]                        # (C+2, OC), f32

    # fx[b, t*C+c] = freq_t * x[b, c].  Exactly one nonzero product per lane
    # and adding 0.0 is exact, so fx is bit-identical to the reference's
    # freq * x.  Pure VPU lane-broadcast MACs; MXU stays idle.
    fx = x[:, 0:1] * coef[0:1, :]
    for c in range(1, C):
        fx = fx + x[:, c:c + 1] * coef[c:c + 1, :]

    # Single EUP pass for all frequency bands: cos(z) = sin(z + pi/2) via the
    # constant phase row (error bounded by ~1 ulp of the argument).
    trig = jnp.sin(fx + coef[C:C + 1, :])

    # Identity lanes (term 0) carry fx = x exactly.
    out = jnp.where(coef[C + 1:C + 2, :] > 0.5, fx, trig)
    o_ref[...] = out.astype(o_ref.dtype)


class Embedding:
    """JAX/Pallas port of nsvf.model.Embedding (no learned params)."""

    def __init__(self, in_channels, N_freqs, logscale=True):
        self.N_freqs = N_freqs
        self.in_channels = in_channels
        self.out_channels = in_channels * (2 * N_freqs + 1)
        if logscale:
            freq_bands = 2.0 ** np.linspace(0.0, N_freqs - 1, N_freqs)
        else:
            freq_bands = np.linspace(1.0, 2.0 ** (N_freqs - 1), N_freqs)
        # Deterministic, shape-derived constants (analog of self.freq_bands).
        self.freq_bands = tuple(float(f) for f in freq_bands)

        # Per-lane constant table consumed by the kernel (see kernel docstring).
        C, OC = in_channels, self.out_channels
        coef = np.zeros((C + 2, OC), np.float32)
        for c in range(C):                      # term 0: identity
            coef[c, c] = 1.0
            coef[C + 1, c] = 1.0
        for b, f in enumerate(self.freq_bands):
            for s, phase in enumerate((0.0, np.pi / 2.0)):   # sin, then cos
                t = 1 + 2 * b + s
                for c in range(C):
                    lane = t * C + c
                    coef[c, lane] = f
                    coef[C, lane] = phase
        self._coef = jnp.asarray(coef)

    def __call__(self, x, *, block_rows=1024, out_dtype=None):
        """x: (B, in_channels) -> (B, out_channels), channel order
        [x, sin(f0 x), cos(f0 x), sin(f1 x), cos(f1 x), ...]."""
        assert x.ndim == 2
        B, C = x.shape
        assert C == self.in_channels
        out_dtype = jnp.dtype(x.dtype if out_dtype is None else out_dtype)
        OC = self.out_channels

        # Row tile: packed-sublane multiple of the OUTPUT dtype
        # (8 f32 / 16 bf16 / 32 int8-fp8), or the full batch for small B.
        sub = 8 * max(1, 4 // out_dtype.itemsize)
        tb = int(min(int(block_rows), B))
        if tb < B:
            tb = min(((tb + sub - 1) // sub) * sub, B)
        nb = pl.cdiv(B, tb)
        Bp = nb * tb

        # Pad only the (tiny) input; the expanded output is written once.
        xp = x if Bp == B else jnp.pad(x, ((0, Bp - B), (0, 0)))

        kernel = functools.partial(_embedding_kernel, in_channels=C)
        out = pl.pallas_call(
            kernel,
            out_shape=jax.ShapeDtypeStruct((Bp, OC), out_dtype),
            grid=(nb,),
            in_specs=[
                pl.BlockSpec((tb, C), lambda i: (i, 0)),
                pl.BlockSpec((C + 2, OC), lambda i: (0, 0)),
            ],
            out_specs=pl.BlockSpec((tb, OC), lambda i: (i, 0)),
            # Per-step VMEM (~2 * (tb*128*4 + tb*ceil(OC/128)*128*itemsize))
            # is ~1-2 MiB for the defaults, well inside the default scoped
            # VMEM on v5e/v6e/v7x, so no vmem_limit_bytes override is needed.
            compiler_params=pltpu.CompilerParams(
                dimension_semantics=("parallel",)),
        )(xp, self._coef)

        if Bp != B:
            # TODO(synk): this slice re-copies the expanded tensor; prefer
            # batch sizes that are a multiple of the row tile.
            out = out[:B]
        return out


def _reference(x, freq_bands):
    out = [x]
    for f in freq_bands:
        out.append(jnp.sin(f * x))
        out.append(jnp.cos(f * x))
    return jnp.concatenate(out, axis=-1)


if __name__ == "__main__":
    k1, k2 = jax.random.split(jax.random.PRNGKey(0))

    # Small canonical case: xyz coordinates, 4 frequency bands.
    B, C, N_freqs = 8, 3, 4
    x = jax.random.normal(k1, (B, C), dtype=jnp.float32)
    emb = Embedding(in_channels=C, N_freqs=N_freqs, logscale=True)
    out = jax.block_until_ready(emb(x))
    assert out.shape == (B, emb.out_channels), out.shape
    ref = _reference(x, emb.freq_bands)
    assert jnp.allclose(out, ref, atol=1e-5, rtol=1e-5), "mismatch vs reference"

    # Multi-block grid with a ragged tail (exercises padding + pipelining).
    B2, N2 = 1000, 10
    x2 = jax.random.normal(k2, (B2, C), dtype=jnp.float32)
    emb2 = Embedding(in_channels=C, N_freqs=N2, logscale=True)
    out2 = jax.block_until_ready(emb2(x2, block_rows=256))
    assert out2.shape == (B2, emb2.out_channels), out2.shape
    ref2 = _reference(x2, emb2.freq_bands)
    assert jnp.allclose(out2, ref2, atol=2e-3, rtol=2e-3), "mismatch (ragged)"

    # bf16 output path (halves dominant HBM write traffic; compute stays f32).
    out3 = jax.block_until_ready(
        emb2(x2, block_rows=192, out_dtype=jnp.bfloat16))
    assert out3.dtype == jnp.bfloat16
    assert out3.shape == (B2, emb2.out_channels)
    assert jnp.allclose(out3.astype(jnp.float32), ref2,
                        atol=3e-2, rtol=3e-2), "mismatch (bf16)"

    print("KERNEL_OK")
</pallas_src>

<mosaic_0001>
module attributes {stable_mosaic.version = 11 : i64} {
  func.func @_embedding_kernel(%arg0: i32, %arg1: memref<8x3xf32, #tpu.memory_space<vmem>>, %arg2: memref<5x27xf32, #tpu.memory_space<vmem>>, %arg3: memref<8x27xf32, #tpu.memory_space<vmem>>) attributes {dimension_semantics = [#tpu.dimension_semantics<parallel>], iteration_bounds = array<i64: 1>, scalar_prefetch = 0 : i64, scratch_operands = 0 : i64, tpu.core_type = #tpu.core_type<tc>, window_params = [{transform_indices = @transform_0, window_bounds = array<i64: 8, 3>}, {pipeline_mode = #tpu.pipeline_mode<synchronous>, transform_indices = @transform_1, window_bounds = array<i64: 5, 27>}, {transform_indices = @transform_2, window_bounds = array<i64: 8, 27>}]} {
    %c0 = arith.constant 0 : index
    %c0_0 = arith.constant 0 : index
    %0 = vector.load %arg1[%c0, %c0_0] : memref<8x3xf32, #tpu.memory_space<vmem>>, vector<8x3xf32>
    %c0_1 = arith.constant 0 : index
    %c0_2 = arith.constant 0 : index
    %1 = vector.load %arg2[%c0_1, %c0_2] : memref<5x27xf32, #tpu.memory_space<vmem>>, vector<5x27xf32>
    %2 = vector.extract_strided_slice %0 {offsets = [0, 0], sizes = [8, 1], strides = [1, 1]} : vector<8x3xf32> to vector<8x1xf32>
    %3 = vector.extract_strided_slice %1 {offsets = [0, 0], sizes = [1, 27], strides = [1, 1]} : vector<5x27xf32> to vector<1x27xf32>
    %4 = vector.broadcast %2 : vector<8x1xf32> to vector<8x27xf32>
    %5 = vector.broadcast %3 : vector<1x27xf32> to vector<8x27xf32>
    %6 = arith.mulf %4, %5 : vector<8x27xf32>
    %7 = vector.extract_strided_slice %0 {offsets = [0, 1], sizes = [8, 1], strides = [1, 1]} : vector<8x3xf32> to vector<8x1xf32>
    %8 = vector.extract_strided_slice %1 {offsets = [1, 0], sizes = [1, 27], strides = [1, 1]} : vector<5x27xf32> to vector<1x27xf32>
    %9 = vector.broadcast %7 : vector<8x1xf32> to vector<8x27xf32>
    %10 = vector.broadcast %8 : vector<1x27xf32> to vector<8x27xf32>
    %11 = arith.mulf %9, %10 : vector<8x27xf32>
    %12 = arith.addf %6, %11 : vector<8x27xf32>
    %13 = vector.extract_strided_slice %0 {offsets = [0, 2], sizes = [8, 1], strides = [1, 1]} : vector<8x3xf32> to vector<8x1xf32>
    %14 = vector.extract_strided_slice %1 {offsets = [2, 0], sizes = [1, 27], strides = [1, 1]} : vector<5x27xf32> to vector<1x27xf32>
    %15 = vector.broadcast %13 : vector<8x1xf32> to vector<8x27xf32>
    %16 = vector.broadcast %14 : vector<1x27xf32> to vector<8x27xf32>
    %17 = arith.mulf %15, %16 : vector<8x27xf32>
    %18 = arith.addf %12, %17 : vector<8x27xf32>
    %19 = vector.extract_strided_slice %1 {offsets = [3, 0], sizes = [1, 27], strides = [1, 1]} : vector<5x27xf32> to vector<1x27xf32>
    %20 = vector.broadcast %19 : vector<1x27xf32> to vector<8x27xf32>
    %21 = arith.addf %18, %20 : vector<8x27xf32>
    %22 = math.sin %21 : vector<8x27xf32>
    %23 = vector.extract_strided_slice %1 {offsets = [4, 0], sizes = [1, 27], strides = [1, 1]} : vector<5x27xf32> to vector<1x27xf32>
    %cst = arith.constant 5.000000e-01 : f32
    %24 = vector.broadcast %cst : f32 to vector<1x27xf32>
    %25 = arith.cmpf ogt, %23, %24 : vector<1x27xf32>
    %26 = vector.shape_cast %25 : vector<1x27xi1> to vector<1x27xi1>
    %27 = vector.broadcast %26 : vector<1x27xi1> to vector<8x27xi1>
    %28 = arith.select %27, %18, %22 : vector<8x27xi1>, vector<8x27xf32>
    %c0_3 = arith.constant 0 : index
    %c0_4 = arith.constant 0 : index
    %29 = vector.load %arg3[%c0_3, %c0_4] : memref<8x27xf32, #tpu.memory_space<vmem>>, vector<8x27xf32>
    tpu.vector_store %arg3[%c0_3, %c0_4], %28 {strides = array<i32>} : memref<8x27xf32, #tpu.memory_space<vmem>>, vector<8x27xf32>,
    return
  }
  func.func @transform_0(%arg0: i32) -> (i32, i32) {
    %c0_i32 = arith.constant 0 : i32
    %c0_i32_0 = arith.constant 0 : i32
    return %arg0, %c0_i32 : i32, i32
  }
  func.func @transform_1(%arg0: i32) -> (i32, i32) {
    %c0_i32 = arith.constant 0 : i32
    %c0_i32_0 = arith.constant 0 : i32
    %c0_i32_1 = arith.constant 0 : i32
    return %c0_i32, %c0_i32_0 : i32, i32
  }
  func.func @transform_2(%arg0: i32) -> (i32, i32) {
    %c0_i32 = arith.constant 0 : i32
    %c0_i32_0 = arith.constant 0 : i32
    return %arg0, %c0_i32 : i32, i32
  }
}

</mosaic_0001>

<llo_original>
// kernel: tpu_custom_call.1
$region0: #{tpu_custom_call.1}
  #allocation0 [shape = 'u32[]', space=smem, size = 0x4, offset = 0x4, fixed_abs, tag = 'smem constant byte address 0x4 - core index']
  #allocation1 [shape = 'u32[144,128]{1,0:T(1,128)}', space=vmem, size = 0x12000, scoped, tag = 'internal scratch']
  %s0 = inlined_call_operand.vmem [shape: f32[8,3], index: 0, kind: input, shape index: {}]
  %s1 = inlined_call_operand.vmem [shape: f32[5,27], index: 1, kind: input, shape index: {}]
  %s2 = inlined_call_operand.hbm [shape: f32[8,27], index: 2, kind: output, shape index: {}]
  %s3 = sld [smem:[#allocation0]]
  $region18: #{tpu_custom_call.1} parent=0
    _
  %s5 = ssub.s32 1, %s3
  %s6 = scalar_select 0, %s5, %s3
  $region1: #{tpu_custom_call.1} parent=0
    #allocation2 [shape = 'u8[4096]{0}', space=vmem, size = 0x1000, scoped, tag = 'output window, operand 0, single buffered']
    #allocation3 [shape = 's32[1]{0}', space=sflag, size = 0x4, scoped, tag = 'scoped memory for tpu_custom_call.1']
    %7 = vsyncpa [#allocation3], 0
    // Predicated region
    $region2: #{tpu_custom_call.1} parent=1 // pred_check
      _
    $region3: #{tpu_custom_call.1} parent=1 // pred_check_branch
      %9 = sbr.rel (0) target = $region5
    $region4: #{tpu_custom_call.1} parent=1 // pred_region
      _
    $region5: #{tpu_custom_call.1} parent=1 // pred_fallthru
      _
    // Predicated region
    $region6: #{tpu_custom_call.1} parent=1 // pred_check
      _
    $region7: #{tpu_custom_call.1} parent=1 // pred_check_branch
      %11 = sbr.rel (0) target = $region9
    $region8: #{tpu_custom_call.1} parent=1 // pred_region
      _
    $region9: #{tpu_custom_call.1} parent=1 // pred_fallthru
      _
    %v12 = vld [vmem:[%s0] sm:$0xff]
    %v13 = vld [vmem:[%s1] sm:$0x1f]
    %15 = vset.pattern.permute.xlu0 0
    %16 = vperm.xlu0 %15, %v12
    %v17 = vpop.permute.xlu0 %16
    %v19 = vlaneseq
    %v20 = vshrl.u32 %v19, 7
    %v21 = vsub.s32 0, %v20
    %v22 = vrot.slane %v13, %v21
    %v23 = vmul.f32 %v17, %v22
    %24 = vset.pattern.permute.xlu0 1
    %25 = vperm.xlu0 %24, %v12
    %v26 = vpop.permute.xlu0 %25
    %v28 = vlaneseq
    %v29 = vshrl.u32 %v28, 7
    %v30 = vsub.s32 1, %v29
    %v31 = vrot.slane %v13, %v30
    %v32 = vmul.f32 %v26, %v31
    %v33 = vadd.f32 %v23, %v32
    %34 = vset.pattern.permute.xlu0 2
    %35 = vperm.xlu0 %34, %v12
    %v36 = vpop.permute.xlu0 %35
    %v38 = vlaneseq
    %v39 = vshrl.u32 %v38, 7
    %v40 = vsub.s32 2, %v39
    %v41 = vrot.slane %v13, %v40
    %v42 = vmul.f32 %v36, %v41
    %v43 = vadd.f32 %v33, %v42
    %v44 = vlaneseq
    %v45 = vshrl.u32 %v44, 7
    %v46 = vsub.s32 3, %v45
    %v47 = vrot.slane %v13, %v46
    %v48 = vadd.f32 %v43, %v47
    %v49 = vand.u32 2147483647, %v48
    %vm50 = vcmp.le.f32.partialorder %v49, 0.7853982
    %vm51 = vcmp.lt.s32.totalorder %v48, 0
    %v52 = vand.u32 %v48, 2139095040
    %v53 = vshrl.u32 %v52, 23
    %v54 = vsub.s32 %v53, 127
    %v55 = vand.u32 2147483647, %v48
    %v56 = vand.u32 %v55, 8388607
    %v57 = vor.u32 %v56, 8388608
    %v58 = vsub.s32 0, %v57
    %v59 = vadd.s32 %v54, 1
    %vm60 = vcmp.gt.s32.totalorder %v59, 0
    %v61 = vsel %vm60, %v59, 0
    %v62 = vshrl.u32 %v61, 5
    %v63 = vand.u32 %v61, 31
    %v64 = vsub.s32 32, %v63
    %v65 = vshrl.u32 683565275, %v64
    %v66 = vshll.u32 683565275, %v63
    %v67 = vshrl.u32 2475754826, %v64
    %v68 = vor.u32 %v66, %v67
    %v69 = vshll.u32 2475754826, %v63
    %v70 = vshrl.u32 2131351028, %v64
    %v71 = vor.u32 %v69, %v70
    %v72 = vshll.u32 2131351028, %v63
    %v73 = vshrl.u32 2102212464, %v64
    %v74 = vor.u32 %v72, %v73
    %v75 = vshll.u32 2102212464, %v63
    %v76 = vshrl.u32 920167782, %v64
    %v77 = vor.u32 %v75, %v76
    %v78 = vshll.u32 920167782, %v63
    %v79 = vshrl.u32 1326507024, %v64
    %v80 = vor.u32 %v78, %v79
    %vm81 = vcmp.lt.s32.totalorder %v62, 1
    %vm82 = vcmp.lt.s32.totalorder %v62, 2
    %vm83 = vcmp.lt.s32.totalorder %v62, 3
    %vm84 = vcmp.lt.s32.totalorder %v62, 4
    %v85 = vsel %vm81, %v65, %v68
    %v86 = vsel %vm84, %v74, 2102212464
    %v87 = vsel %vm83, %v71, %v86
    %v88 = vsel %vm82, %v85, %v87
    %v89 = vsel %vm81, %v68, %v71
    %v90 = vsel %vm84, %v77, 920167782
    %v91 = vsel %vm83, %v74, %v90
    %v92 = vsel %vm82, %v89, %v91
    %v93 = vsel %vm81, %v71, %v74
    %v94 = vsel %vm84, %v80, 1326507024
    %v95 = vsel %vm83, %v77, %v94
    %v96 = vsel %vm82, %v93, %v95
    %v97 = vshll.u32 %v57, 8
    %v98 = vmul.u32.u64.compose %v97, %v96
    %v99 = vextract.low.u32 %v98
    %v100 = vextract.high.u32 %v98
    %v101 = vmul.u32.u64.compose %v97, %v92
    %v102 = vextract.low.u32 %v101
    %v103 = vextract.high.u32 %v101
    %v104 = vmul.u32 %v97, %v88
    %v105 = vadd.s32 %v100, %v102
    %vm106 = vc.u32 %v100, %v102
    %v107 = vadd.s32 %v103, 1
    %v108 = vsel %vm106, %v107, %v103
    %v109 = vadd.s32 %v104, %v108
    %v110 = vadd.s32 %v109, 536870912
    %v111 = vshrl.u32 %v110, 30
    %v112 = vshll.u32 %v111, 30
    %v113 = vsub.s32 %v109, %v112
    %vm114 = vcmp.lt.s32.totalorder %v113, 0
    %v115 = vsub.s32 0, %v113
    %v116 = vsel %vm114, %v115, %v113
    %v117 = vclz %v116
    %v118 = vsub.s32 %v117, 2
    %vm119 = vcmp.gt.s32.totalorder 0, %v118
    %v120 = vsel %vm119, 0, %v118
    %v121 = vsub.s32 32, %v120
    %v122 = vshll.u32 %v113, %v120
    %v123 = vshrl.u32 %v105, %v121
    %v124 = vor.u32 %v122, %v123
    %v125 = vsub.s32 4294967266, %v120
    %v126 = vadd.s32 %v125, 127
    %v127 = vshll.u32 %v126, 23
    %v128 = vor.u32 4788187, %v127
    %v129 = vand.u32 2147483647, %v128
    %v131 = vcvt.s32.f32 %v124
    %v132 = vmul.f32 %v131, %v129
    %v133 = vxor.u32 %v132, 2147483648
    %v134 = vsel %vm51, %v133, %v132
    %v135 = vsub.s32 4, %v111
    %v136 = vsel %vm51, %v135, %v111
    %v137 = vsel %vm50, %v48, %v134
    %v138 = vsel %vm50, 0, %v136
    %v139 = vcosq.f32.pop %v137
    %v140 = vsinq.f32.pop %v137
    %vm141 = vweird.f32 %v48
    %v142 = vadd.s32 %v138, 3
    %v143 = vand.u32 %v142, 3
    %vm144 = vcmp.lt.s32.totalorder %v143, 2
    %vm145 = vcmp.eq.s32.totalorder %v143, 0
    %v146 = vxor.u32 %v140, 2147483648
    %v147 = vsel %vm145, %v139, %v146
    %vm148 = vcmp.eq.s32.totalorder %v143, 2
    %v149 = vxor.u32 %v139, 2147483648
    %v150 = vsel %vm148, %v149, %v140
    %v151 = vsel %vm144, %v147, %v150
    %v152 = vsel %vm141, nan, %v151
    %vm153 = vcmp.gt.f32.partialorder %v13, 0.5
    %v154 = vsel %vm153, 1, 0
    %v155 = vlaneseq
    %v156 = vshrl.u32 %v155, 7
    %v157 = vsub.s32 4, %v156
    %v158 = vrot.slane %v154, %v157
    %vm159 = vcmp.eq.s32.totalorder %v158, 1
    %v160 = vsel %vm159, %v43, %v152
    %vm161 = vcmask 220160
    %162 = vst.msk [vmem:[#allocation2] sm:$0xff] %vm161, %v160
    // Predicated region
    $region10: #{tpu_custom_call.1} parent=1 // pred_check
      _
    $region11: #{tpu_custom_call.1} parent=1 // pred_check_branch
      %164 = sbr.rel (0) target = $region13
    $region12: #{tpu_custom_call.1} parent=1 // pred_region
      %s166 = ssub.s32 128, 128
      %167 = vsyncadd [#allocation3], %s166
      %s169 = sshll.u32 [#allocation2], 4
      %s170 = int_to_ptr.vmem [resolvable:$true] %s169
      %172 = dma.vmem_to_hbm [thread:$0]  %s170, 128, %s2, [#allocation3]
    $region13: #{tpu_custom_call.1} parent=1 // pred_fallthru
      _
    // Predicated region
    $region14: #{tpu_custom_call.1} parent=1 // pred_check
      _
    $region15: #{tpu_custom_call.1} parent=1 // pred_check_branch
      %174 = sbr.rel (0) target = $region17
    $region16: #{tpu_custom_call.1} parent=1 // pred_region
      %175 = dma.done [#allocation3], 128
    $region17: #{tpu_custom_call.1} parent=1 // pred_fallthru
      _
    %176 = vsyncpa [#allocation3], 1

</llo_original>
